<compile_context>
chip_gen: v7x
topology: tpu7x:2x2x1
jax: 0.10.0
libtpu: 0.0.40
codegen_flags: <defaults>
</compile_context>

<pallas_src>
import functools

import jax
import jax.numpy as jnp
from jax import lax
from jax.experimental import pallas as pl
from jax.experimental.pallas import tpu as pltpu


def _cdc_target_anchor_kernel(fs_ref, ft_ref, ls_ref, lt_ref,
                              loss_ref, valid_ref,
                              *, pseudo_size, block_p, temperature,
                              scale_by_temperature):
    # Source features: resident across the whole grid (same block every step).
    fs = fs_ref[...]                                           # (B, D), input dtype
    fs32 = fs.astype(jnp.float32)
    inv_s = lax.rsqrt(jnp.sum(fs32 * fs32, axis=1, keepdims=True) + jnp.float32(1e-24))
    # Keep MXU operands in the input dtype (bf16 inputs stay bf16; f32 stays f32).
    fs_n = (fs32 * inv_s).astype(fs.dtype)                     # (B, D)

    # Target-anchor tile; fold 1/temperature into the per-row normalization scale.
    ft = ft_ref[...]                                           # (TP, D)
    ft32 = ft.astype(jnp.float32)
    inv_t = lax.rsqrt(jnp.sum(ft32 * ft32, axis=1, keepdims=True) + jnp.float32(1e-24))
    inv_t = inv_t * jnp.float32(1.0 / temperature)
    ft_n = (ft32 * inv_t).astype(ft.dtype)                     # (TP, D)

    # anchor_dot_contrast / temperature: contract last dim vs last dim -> no
    # transpose of fs is emitted before the MXU.  f32 accumulation.
    adc = lax.dot_general(ft_n, fs_n,
                          dimension_numbers=(((1,), (1,)), ((), ())),
                          preferred_element_type=jnp.float32)  # (TP, B)

    # Label-equality mask: (TP, 1) == (1, B) -> (TP, B).
    mask = (lt_ref[...] == ls_ref[...]).astype(jnp.float32)

    # Numerically stable row log-softmax terms, without materializing log_probs:
    #   sum_j mask*(logits - log(denom)) = sum_j mask*logits - num_pos*log(denom)
    logits_max = jnp.max(adc, axis=1, keepdims=True)           # (TP, 1)
    logits = adc - logits_max                                  # (TP, B)
    denom = jnp.sum(jnp.exp(logits), axis=1, keepdims=True)    # (TP, 1)
    num_pos = jnp.sum(mask, axis=1, keepdims=True)             # (TP, 1)
    row_sum = (jnp.sum(logits * mask, axis=1, keepdims=True)
               - num_pos * jnp.log(denom))                     # (TP, 1)
    # TODO(synk): the PyTorch torch.isnan(log_probs) raise has no in-kernel equivalent.

    # Mask out rows with no positives and the padded rows of the last P block.
    row_ids = (lax.broadcasted_iota(jnp.int32, (block_p, 1), 0)
               + pl.program_id(0) * block_p)
    in_bounds = row_ids < pseudo_size
    valid = (num_pos > 0.0) & in_bounds                        # (TP, 1) bool
    per_row = jnp.where(valid, -row_sum / jnp.where(valid, num_pos, 1.0),
                        jnp.float32(0.0))
    if scale_by_temperature:
        per_row = per_row * jnp.float32(temperature)

    loss_ref[...] = per_row
    valid_ref[...] = valid.astype(jnp.float32)


def cdc_target_anchor_loss(feature_s, feature_t, label_s, label_t,
                           temperature=0.1, scale_by_temperature=True,
                           block_p=None):
    """Pallas implementation of CDCTargetAnchor.forward.

    feature_s: (batch_size, hidden_dim) float
    feature_t: (pseudo_size, hidden_dim) float
    label_s:   (batch_size,)  int
    label_t:   (pseudo_size,) int
    returns scalar f32 loss.
    """
    batch_size, hidden_dim = feature_s.shape
    pseudo_size, hidden_dim_t = feature_t.shape
    if hidden_dim != hidden_dim_t:
        raise ValueError("hidden dims of feature_s / feature_t differ")
    if label_s.shape[0] != batch_size or label_t.shape[0] != pseudo_size:
        raise ValueError("Num of labels does not match num of features")

    if block_p is None:
        # Whole-P block for small problems; otherwise a sublane-aligned row tile that
        # bounds the (TP, B) f32 intermediates within default scoped VMEM on
        # v5e/v6e/v7x.  (For extremely large B, B-tiling of the row softmax would
        # additionally be required.)
        block_p = pseudo_size if pseudo_size <= 256 else 256
    if block_p != pseudo_size and block_p % 8 != 0:
        raise ValueError("block_p must be a multiple of 8 or equal pseudo_size")

    ls = label_s.astype(jnp.int32).reshape(1, batch_size)    # lane-dense row
    lt = label_t.astype(jnp.int32).reshape(pseudo_size, 1)   # sublane column

    grid_p = pl.cdiv(pseudo_size, block_p)
    kernel = functools.partial(
        _cdc_target_anchor_kernel,
        pseudo_size=pseudo_size, block_p=block_p,
        temperature=float(temperature),
        scale_by_temperature=bool(scale_by_temperature))

    loss_rows, valid_rows = pl.pallas_call(
        kernel,
        out_shape=(jax.ShapeDtypeStruct((pseudo_size, 1), jnp.float32),
                   jax.ShapeDtypeStruct((pseudo_size, 1), jnp.float32)),
        grid=(grid_p,),
        in_specs=[
            pl.BlockSpec((batch_size, hidden_dim), lambda i: (0, 0)),  # fs: resident
            pl.BlockSpec((block_p, hidden_dim), lambda i: (i, 0)),     # ft: P-tile
            pl.BlockSpec((1, batch_size), lambda i: (0, 0)),           # ls: resident
            pl.BlockSpec((block_p, 1), lambda i: (i, 0)),              # lt: P-tile
        ],
        out_specs=(pl.BlockSpec((block_p, 1), lambda i: (i, 0)),
                   pl.BlockSpec((block_p, 1), lambda i: (i, 0))),
        compiler_params=pltpu.CompilerParams(
            dimension_semantics=("parallel",)),
    )(feature_s, feature_t, ls, lt)

    # Masked mean over anchor rows.  If no row has a positive this is NaN, matching
    # PyTorch's .mean() over an empty selection.
    return jnp.sum(loss_rows) / jnp.sum(valid_rows)


if __name__ == "__main__":
    def ref(fs, ft, ls, lt, temperature=0.1, scale_by_temperature=True):
        fs = fs / jnp.maximum(jnp.linalg.norm(fs, axis=1, keepdims=True), 1e-12)
        ft = ft / jnp.maximum(jnp.linalg.norm(ft, axis=1, keepdims=True), 1e-12)
        mask = (lt[:, None] == ls[None, :]).astype(jnp.float32)
        adc = (ft @ fs.T) / temperature
        logits = adc - jnp.max(adc, axis=1, keepdims=True)
        denom = jnp.sum(jnp.exp(logits), axis=1, keepdims=True)
        log_probs = logits - jnp.log(denom)
        num_pos = jnp.sum(mask, axis=1)
        row = jnp.sum(log_probs * mask, axis=1)
        valid = num_pos > 0
        per_row = jnp.where(valid, -row / jnp.where(valid, num_pos, 1.0), 0.0)
        if scale_by_temperature:
            per_row = per_row * temperature
        return jnp.sum(per_row) / jnp.sum(valid.astype(jnp.float32))

    # Case 1: tiny shapes, whole-P block (single grid step).
    k1, k2, k3, k4 = jax.random.split(jax.random.PRNGKey(0), 4)
    B, P, D, C = 8, 8, 32, 4
    feature_s = jax.random.normal(k1, (B, D), dtype=jnp.float32)
    feature_t = jax.random.normal(k2, (P, D), dtype=jnp.float32)
    label_s = jax.random.randint(k3, (B,), 0, C, dtype=jnp.int32)
    label_t = jax.random.randint(k4, (P,), 0, C, dtype=jnp.int32)

    loss = jax.block_until_ready(
        cdc_target_anchor_loss(feature_s, feature_t, label_s, label_t,
                               temperature=0.1, scale_by_temperature=True))
    expected = ref(feature_s, feature_t, label_s, label_t)
    assert jnp.isfinite(loss), "loss is not finite"
    assert jnp.allclose(loss, expected, rtol=1e-4, atol=1e-4), (loss, expected)

    # Case 2: multi-block P tiling (exercises the parallel P grid path).
    k5, k6, k7, k8 = jax.random.split(jax.random.PRNGKey(1), 4)
    B2, P2, D2, C2 = 16, 24, 32, 4
    fs2 = jax.random.normal(k5, (B2, D2), dtype=jnp.float32)
    ft2 = jax.random.normal(k6, (P2, D2), dtype=jnp.float32)
    ls2 = jax.random.randint(k7, (B2,), 0, C2, dtype=jnp.int32)
    lt2 = jax.random.randint(k8, (P2,), 0, C2, dtype=jnp.int32)

    loss2 = jax.block_until_ready(
        cdc_target_anchor_loss(fs2, ft2, ls2, lt2, block_p=8))
    expected2 = ref(fs2, ft2, ls2, lt2)
    assert jnp.isfinite(loss2), "tiled loss is not finite"
    assert jnp.allclose(loss2, expected2, rtol=1e-4, atol=1e-4), (loss2, expected2)

    print("KERNEL_OK")
</pallas_src>

<mosaic_0001>
module attributes {stable_mosaic.version = 11 : i64} {
  func.func @_cdc_target_anchor_kernel(%arg0: i32, %arg1: memref<8x32xf32, #tpu.memory_space<vmem>>, %arg2: memref<8x32xf32, #tpu.memory_space<vmem>>, %arg3: memref<1x8xi32, #tpu.memory_space<vmem>>, %arg4: memref<8x1xi32, #tpu.memory_space<vmem>>, %arg5: memref<8x1xf32, #tpu.memory_space<vmem>>, %arg6: memref<8x1xf32, #tpu.memory_space<vmem>>) attributes {dimension_semantics = [#tpu.dimension_semantics<parallel>], iteration_bounds = array<i64: 1>, scalar_prefetch = 0 : i64, scratch_operands = 0 : i64, tpu.core_type = #tpu.core_type<tc>, window_params = [{pipeline_mode = #tpu.pipeline_mode<synchronous>, transform_indices = @transform_0, window_bounds = array<i64: 8, 32>}, {transform_indices = @transform_1, window_bounds = array<i64: 8, 32>}, {pipeline_mode = #tpu.pipeline_mode<synchronous>, transform_indices = @transform_2, window_bounds = array<i64: 1, 8>}, {transform_indices = @transform_3, window_bounds = array<i64: 8, 1>}, {transform_indices = @transform_4, window_bounds = array<i64: 8, 1>}, {transform_indices = @transform_5, window_bounds = array<i64: 8, 1>}]} {
    %c0 = arith.constant 0 : index
    %c0_0 = arith.constant 0 : index
    %0 = vector.load %arg1[%c0, %c0_0] : memref<8x32xf32, #tpu.memory_space<vmem>>, vector<8x32xf32>
    %1 = arith.mulf %0, %0 : vector<8x32xf32>
    %cst = arith.constant dense<0.000000e+00> : vector<8xf32>
    %2 = vector.multi_reduction <add>, %1, %cst [1] : vector<8x32xf32> to vector<8xf32>
    %3 = vector.shape_cast %2 : vector<8xf32> to vector<8x1xf32>
    %cst_1 = arith.constant 1.000000e-24 : f32
    %4 = vector.broadcast %cst_1 : f32 to vector<8x1xf32>
    %5 = arith.addf %3, %4 : vector<8x1xf32>
    %6 = math.rsqrt %5 : vector<8x1xf32>
    %7 = vector.broadcast %6 : vector<8x1xf32> to vector<8x32xf32>
    %8 = arith.mulf %0, %7 : vector<8x32xf32>
    %c0_2 = arith.constant 0 : index
    %c0_3 = arith.constant 0 : index
    %9 = vector.load %arg2[%c0_2, %c0_3] : memref<8x32xf32, #tpu.memory_space<vmem>>, vector<8x32xf32>
    %10 = arith.mulf %9, %9 : vector<8x32xf32>
    %cst_4 = arith.constant dense<0.000000e+00> : vector<8xf32>
    %11 = vector.multi_reduction <add>, %10, %cst_4 [1] : vector<8x32xf32> to vector<8xf32>
    %12 = vector.shape_cast %11 : vector<8xf32> to vector<8x1xf32>
    %cst_5 = arith.constant 1.000000e-24 : f32
    %13 = vector.broadcast %cst_5 : f32 to vector<8x1xf32>
    %14 = arith.addf %12, %13 : vector<8x1xf32>
    %15 = math.rsqrt %14 : vector<8x1xf32>
    %cst_6 = arith.constant 1.000000e+01 : f32
    %16 = vector.broadcast %cst_6 : f32 to vector<8x1xf32>
    %17 = arith.mulf %15, %16 : vector<8x1xf32>
    %18 = vector.broadcast %17 : vector<8x1xf32> to vector<8x32xf32>
    %19 = arith.mulf %9, %18 : vector<8x32xf32>
    %cst_7 = arith.constant dense<0.000000e+00> : vector<8x8xf32>
    %20 = tpu.matmul %19, %8, %cst_7 {dimension_numbers = #tpu.dot_dimension_numbers<[1], [1], [0], [0], [0, 0, 1, 0], [], []>} : vector<8x32xf32>, vector<8x32xf32>, vector<8x8xf32> -> vector<8x8xf32>
    %c0_8 = arith.constant 0 : index
    %c0_9 = arith.constant 0 : index
    %21 = vector.load %arg4[%c0_8, %c0_9] : memref<8x1xi32, #tpu.memory_space<vmem>>, vector<8x1xi32>
    %c0_10 = arith.constant 0 : index
    %c0_11 = arith.constant 0 : index
    %22 = vector.load %arg3[%c0_10, %c0_11] : memref<1x8xi32, #tpu.memory_space<vmem>>, vector<1x8xi32>
    %23 = vector.broadcast %21 : vector<8x1xi32> to vector<8x8xi32>
    %24 = vector.broadcast %22 : vector<1x8xi32> to vector<8x8xi32>
    %25 = arith.cmpi eq, %23, %24 : vector<8x8xi32>
    %26 = arith.extui %25 : vector<8x8xi1> to vector<8x8xi32>
    %27 = arith.sitofp %26 : vector<8x8xi32> to vector<8x8xf32>
    %cst_12 = arith.constant dense<0xFF800000> : vector<8xf32>
    %28 = vector.multi_reduction <maximumf>, %20, %cst_12 [1] : vector<8x8xf32> to vector<8xf32>
    %29 = vector.shape_cast %28 : vector<8xf32> to vector<8x1xf32>
    %30 = vector.broadcast %29 : vector<8x1xf32> to vector<8x8xf32>
    %31 = arith.subf %20, %30 : vector<8x8xf32>
    %32 = math.exp %31 : vector<8x8xf32>
    %cst_13 = arith.constant dense<0.000000e+00> : vector<8xf32>
    %33 = vector.multi_reduction <add>, %32, %cst_13 [1] : vector<8x8xf32> to vector<8xf32>
    %34 = vector.shape_cast %33 : vector<8xf32> to vector<8x1xf32>
    %cst_14 = arith.constant dense<0.000000e+00> : vector<8xf32>
    %35 = vector.multi_reduction <add>, %27, %cst_14 [1] : vector<8x8xf32> to vector<8xf32>
    %36 = vector.shape_cast %35 : vector<8xf32> to vector<8x1xf32>
    %37 = arith.mulf %31, %27 : vector<8x8xf32>
    %cst_15 = arith.constant dense<0.000000e+00> : vector<8xf32>
    %38 = vector.multi_reduction <add>, %37, %cst_15 [1] : vector<8x8xf32> to vector<8xf32>
    %39 = vector.shape_cast %38 : vector<8xf32> to vector<8x1xf32>
    %40 = math.log %34 : vector<8x1xf32>
    %41 = arith.mulf %36, %40 : vector<8x1xf32>
    %42 = arith.subf %39, %41 : vector<8x1xf32>
    %43 = tpu.iota {dimensions = array<i32: 0>} : vector<8x1xi32>
    %c8_i32 = arith.constant 8 : i32
    %44 = arith.muli %arg0, %c8_i32 : i32
    %45 = vector.broadcast %44 : i32 to vector<8x1xi32>
    %46 = arith.addi %43, %45 : vector<8x1xi32>
    %c8_i32_16 = arith.constant 8 : i32
    %47 = vector.broadcast %c8_i32_16 : i32 to vector<8x1xi32>
    %48 = arith.cmpi slt, %46, %47 : vector<8x1xi32>
    %cst_17 = arith.constant 0.000000e+00 : f32
    %49 = vector.broadcast %cst_17 : f32 to vector<8x1xf32>
    %50 = arith.cmpf ogt, %36, %49 : vector<8x1xf32>
    %51 = arith.andi %50, %48 : vector<8x1xi1>
    %cst_18 = arith.constant 0.000000e+00 : f32
    %52 = vector.broadcast %cst_18 : f32 to vector<8x1xf32>
    %53 = arith.subf %52, %42 : vector<8x1xf32>
    %cst_19 = arith.constant 1.000000e+00 : f32
    %54 = vector.broadcast %cst_19 : f32 to vector<8x1xf32>
    %55 = arith.select %51, %36, %54 : vector<8x1xi1>, vector<8x1xf32>
    %56 = arith.divf %53, %55 : vector<8x1xf32>
    %cst_20 = arith.constant 0.000000e+00 : f32
    %57 = vector.broadcast %cst_20 : f32 to vector<8x1xf32>
    %58 = arith.select %51, %56, %57 : vector<8x1xi1>, vector<8x1xf32>
    %cst_21 = arith.constant 1.000000e-01 : f32
    %59 = vector.broadcast %cst_21 : f32 to vector<8x1xf32>
    %60 = arith.mulf %58, %59 : vector<8x1xf32>
    %c0_22 = arith.constant 0 : index
    %c0_23 = arith.constant 0 : index
    %61 = vector.load %arg5[%c0_22, %c0_23] : memref<8x1xf32, #tpu.memory_space<vmem>>, vector<8x1xf32>
    tpu.vector_store %arg5[%c0_22, %c0_23], %60 {strides = array<i32>} : memref<8x1xf32, #tpu.memory_space<vmem>>, vector<8x1xf32>,
    %62 = arith.extui %51 : vector<8x1xi1> to vector<8x1xi32>
    %63 = arith.sitofp %62 : vector<8x1xi32> to vector<8x1xf32>
    %c0_24 = arith.constant 0 : index
    %c0_25 = arith.constant 0 : index
    %64 = vector.load %arg6[%c0_24, %c0_25] : memref<8x1xf32, #tpu.memory_space<vmem>>, vector<8x1xf32>
    tpu.vector_store %arg6[%c0_24, %c0_25], %63 {strides = array<i32>} : memref<8x1xf32, #tpu.memory_space<vmem>>, vector<8x1xf32>,
    return
  }
  func.func @transform_0(%arg0: i32) -> (i32, i32) {
    %c0_i32 = arith.constant 0 : i32
    %c0_i32_0 = arith.constant 0 : i32
    %c0_i32_1 = arith.constant 0 : i32
    return %c0_i32, %c0_i32_0 : i32, i32
  }
  func.func @transform_1(%arg0: i32) -> (i32, i32) {
    %c0_i32 = arith.constant 0 : i32
    %c0_i32_0 = arith.constant 0 : i32
    return %arg0, %c0_i32 : i32, i32
  }
  func.func @transform_2(%arg0: i32) -> (i32, i32) {
    %c0_i32 = arith.constant 0 : i32
    %c0_i32_0 = arith.constant 0 : i32
    %c0_i32_1 = arith.constant 0 : i32
    return %c0_i32, %c0_i32_0 : i32, i32
  }
  func.func @transform_3(%arg0: i32) -> (i32, i32) {
    %c0_i32 = arith.constant 0 : i32
    %c0_i32_0 = arith.constant 0 : i32
    return %arg0, %c0_i32 : i32, i32
  }
  func.func @transform_4(%arg0: i32) -> (i32, i32) {
    %c0_i32 = arith.constant 0 : i32
    %c0_i32_0 = arith.constant 0 : i32
    return %arg0, %c0_i32 : i32, i32
  }
  func.func @transform_5(%arg0: i32) -> (i32, i32) {
    %c0_i32 = arith.constant 0 : i32
    %c0_i32_0 = arith.constant 0 : i32
    return %arg0, %c0_i32 : i32, i32
  }
}

</mosaic_0001>

<llo_original>
// kernel: tpu_custom_call.1
$region0: #{tpu_custom_call.1}
  #allocation0 [shape = 'u32[]', space=smem, size = 0x4, offset = 0x4, fixed_abs, tag = 'smem constant byte address 0x4 - core index']
  #allocation1 [shape = 'u32[144,128]{1,0:T(1,128)}', space=vmem, size = 0x12000, scoped, tag = 'internal scratch']
  %s0 = inlined_call_operand.vmem [shape: f32[8,32], index: 0, kind: input, shape index: {}]
  %s1 = inlined_call_operand.hbm [shape: f32[8,32], index: 1, kind: input, shape index: {}]
  %s2 = inlined_call_operand.vmem [shape: s32[1,8], index: 2, kind: input, shape index: {}]
  %s3 = inlined_call_operand.vmem [shape: s32[8,1], index: 3, kind: input, shape index: {}]
  %s4 = inlined_call_operand.vmem [shape: f32[8,1], index: 4, kind: output, shape index: {0}]
  %s5 = inlined_call_operand.vmem [shape: f32[8,1], index: 5, kind: output, shape index: {1}]
  %6 = xla_tuple %s4, %s5
  %s7 = sld [smem:[#allocation0]]
  $region38: #{tpu_custom_call.1} parent=0
    _
  %s9 = ssub.s32 1, %s7
  %s10 = scalar_select 0, %s9, %s7
  $region1: #{tpu_custom_call.1} parent=0
    #allocation2 [shape = 'u8[4096]{0}', space=vmem, size = 0x1000, scoped, tag = 'input window, operand 1, single buffered']
    #allocation3 [shape = 's32[1]{0}', space=sflag, size = 0x4, scoped, tag = 'scoped memory for tpu_custom_call.1']
    %11 = vsyncpa [#allocation3], 0
    // Predicated region
    $region2: #{tpu_custom_call.1} parent=1 // pred_check
      _
    $region3: #{tpu_custom_call.1} parent=1 // pred_check_branch
      %13 = sbr.rel (0) target = $region5
    $region4: #{tpu_custom_call.1} parent=1 // pred_region
      _
    $region5: #{tpu_custom_call.1} parent=1 // pred_fallthru
      _
    // Predicated region
    $region6: #{tpu_custom_call.1} parent=1 // pred_check
      _
    $region7: #{tpu_custom_call.1} parent=1 // pred_check_branch
      %15 = sbr.rel (0) target = $region9
    $region8: #{tpu_custom_call.1} parent=1 // pred_region
      %s17 = ssub.s32 128, 128
      %18 = vsyncadd [#allocation3], %s17
      %s20 = sshll.u32 [#allocation2], 4
      %s21 = int_to_ptr.vmem [resolvable:$true] %s20
      %23 = dma.hbm_to_vmem [thread:$0]  %s1, 128, %s21, [#allocation3]
    $region9: #{tpu_custom_call.1} parent=1 // pred_fallthru
      _
    // Predicated region
    $region10: #{tpu_custom_call.1} parent=1 // pred_check
      _
    $region11: #{tpu_custom_call.1} parent=1 // pred_check_branch
      %25 = sbr.rel (0) target = $region13
    $region12: #{tpu_custom_call.1} parent=1 // pred_region
      _
    $region13: #{tpu_custom_call.1} parent=1 // pred_fallthru
      _
    // Predicated region
    $region14: #{tpu_custom_call.1} parent=1 // pred_check
      _
    $region15: #{tpu_custom_call.1} parent=1 // pred_check_branch
      %27 = sbr.rel (0) target = $region17
    $region16: #{tpu_custom_call.1} parent=1 // pred_region
      _
    $region17: #{tpu_custom_call.1} parent=1 // pred_fallthru
      _
    // Predicated region
    $region18: #{tpu_custom_call.1} parent=1 // pred_check
      _
    $region19: #{tpu_custom_call.1} parent=1 // pred_check_branch
      %29 = sbr.rel (0) target = $region21
    $region20: #{tpu_custom_call.1} parent=1 // pred_region
      %30 = dma.done [#allocation3], 128
    $region21: #{tpu_custom_call.1} parent=1 // pred_fallthru
      _
    %v31 = vld [vmem:[%s0] sm:$0xff]
    %v32 = vmul.f32 %v31, %v31
    %vm33 = vcmask 261120
    %v34 = vsel %vm33, %v32, 0.0
    %35 = vadd.xlane.f32.xlu0 %v34
    %v36 = vpop.xlane.xlu0 %35
    %v37 = vadd.f32 %v36, 1e-24
    %v38 = vrsqrt.pop %v37
    %v39 = vmul.f32 %v31, %v38
    %v40 = vld [vmem:[#allocation2] sm:$0xff]
    %v41 = vmul.f32 %v40, %v40
    %v42 = vsel %vm33, %v41, 0.0
    %43 = vadd.xlane.f32.xlu0 %v42
    %v44 = vpop.xlane.xlu0 %43
    %v45 = vadd.f32 %v44, 1e-24
    %v46 = vrsqrt.pop %v45
    %v47 = vmul.f32 %v46, 10.0
    %v48 = vmul.f32 %v40, %v47
    %v50 = vsel %vm33, %v48, 0
    %v53 = vsel %vm33, %v39, 0
    %55 = vmatprep.subr.mxu0 0.0
    %56 = vmatpush1.xpose.msra.mxu0 %v53
    %57 = vmatprep.subr.mxu0 0.0
    %58 = vmatpush1.xpose.msra.mxu0 0.0
    %59 = vmatprep.subr.mxu0 0.0
    %60 = vmatpush1.xpose.msra.mxu0 0.0
    %61 = vmatprep.subr.mxu0 0.0
    %62 = vmatpush1.xpose.msra.mxu0 0.0
    %63 = vmatprep.subr.mxu0 0.0
    %64 = vmatpush1.xpose.msra.mxu0 0.0
    %65 = vmatprep.subr.mxu0 0.0
    %66 = vmatpush1.xpose.msra.mxu0 0.0
    %67 = vmatprep.subr.mxu0 0.0
    %68 = vmatpush1.xpose.msra.mxu0 0.0
    %69 = vmatprep.subr.mxu0 0.0
    %70 = vmatpush1.xpose.msra.mxu0 0.0
    %71 = vmatprep.subr.mxu0 0.0
    %72 = vmatpush1.xpose.msra.mxu0 0.0
    %73 = vmatprep.subr.mxu0 0.0
    %74 = vmatpush1.xpose.msra.mxu0 0.0
    %75 = vmatprep.subr.mxu0 0.0
    %76 = vmatpush1.xpose.msra.mxu0 0.0
    %77 = vmatprep.subr.mxu0 0.0
    %78 = vmatpush1.xpose.msra.mxu0 0.0
    %79 = vmatprep.subr.mxu0 0.0
    %80 = vmatpush1.xpose.msra.mxu0 0.0
    %81 = vmatprep.subr.mxu0 0.0
    %82 = vmatpush1.xpose.msra.mxu0 0.0
    %83 = vmatprep.subr.mxu0 0.0
    %84 = vmatpush1.xpose.msra.mxu0 0.0
    %85 = vmatprep.subr.mxu0 0.0
    %86 = vmatpush1.xpose.msra.mxu0 0.0
    %87 = vmatprep.subr.mxu0 0.0
    %88 = vmatpush1.xpose.msra.mxu0 0.0
    %89 = vmatprep.subr.mxu0 0.0
    %90 = vmatpush1.xpose.msra.mxu0 0.0
    %91 = vmatprep.subr.mxu0 0.0
    %92 = vmatpush1.xpose.msra.mxu0 0.0
    %93 = vmatprep.subr.mxu0 0.0
    %94 = vmatpush1.xpose.msra.mxu0 0.0
    %95 = vmatprep.subr.mxu0 0.0
    %96 = vmatpush1.xpose.msra.mxu0 0.0
    %97 = vmatprep.subr.mxu0 0.0
    %98 = vmatpush1.xpose.msra.mxu0 0.0
    %99 = vmatprep.subr.mxu0 0.0
    %100 = vmatpush1.xpose.msra.mxu0 0.0
    %101 = vmatprep.subr.mxu0 0.0
    %102 = vmatpush1.xpose.msra.mxu0 0.0
    %103 = vmatprep.subr.mxu0 0.0
    %104 = vmatpush1.xpose.msra.mxu0 0.0
    %105 = vmatprep.subr.mxu0 0.0
    %106 = vmatpush1.xpose.msra.mxu0 0.0
    %107 = vmatprep.subr.mxu0 0.0
    %108 = vmatpush1.xpose.msra.mxu0 0.0
    %109 = vmatprep.subr.mxu0 0.0
    %110 = vmatpush1.xpose.msra.mxu0 0.0
    %111 = vmatprep.subr.mxu0 0.0
    %112 = vmatpush1.xpose.msra.mxu0 0.0
    %113 = vmatprep.subr.mxu0 0.0
    %114 = vmatpush1.xpose.msra.mxu0 0.0
    %115 = vmatprep.subr.mxu0 0.0
    %116 = vmatpush1.xpose.msra.mxu0 0.0
    %117 = vmatprep.subr.mxu0 0.0
    %118 = vmatpush1.xpose.msra.mxu0 0.0
    %119 = vmatprep.mubr.f32.mxu0 0.0
    %120 = vmatmul.mubr.f32.gmra.mrb[0].mxu0 %v50
    %v121 = vpop.f32.mrb[0].mxu0
    %v122 = vadd.f32 0.0, %v121
    %v123 = vpop.f32.mrb[0].mxu0
    %124 = vdwg.mxu0
    %v125 = vld [vmem:[%s3] sm:$0xff]
    %v126 = vld [vmem:[%s2] sm:$0x1]
    %127 = vset.pattern.permute.xlu0 0
    %128 = vperm.xlu0 %127, %v125
    %v129 = vpop.permute.xlu0 %128
    %v130 = vlaneseq
    %v131 = vshrl.u32 %v130, 7
    %v132 = vsub.s32 0, %v131
    %v133 = vrot.slane %v126, %v132
    %vm134 = vcmp.eq.s32.totalorder %v129, %v133
    %v135 = vsel %vm134, 1, 0
    %v136 = vcvt.s32.f32 %v135
    %vm137 = vcmask 64512
    %v138 = vsel %vm137, %v122, -inf
    %139 = vmax.xlane.f32.xlu0 %v138
    %v140 = vpop.xlane.xlu0 %139
    %v141 = vsub.f32 %v122, %v140
    %v142 = vmul.f32 %v141, 1.442695
    %v143 = vpow.pop %v142
    %v144 = vsel %vm137, %v143, 0.0
    %145 = vadd.xlane.f32.xlu0 %v144
    %v146 = vpop.xlane.xlu0 %145
    %v147 = vsel %vm137, %v136, 0.0
    %148 = vadd.xlane.f32.xlu0 %v147
    %v149 = vpop.xlane.xlu0 %148
    %v150 = vmul.f32 %v141, %v136
    %v151 = vsel %vm137, %v150, 0.0
    %152 = vadd.xlane.f32.xlu0 %v151
    %v153 = vpop.xlane.xlu0 %152
    %v154 = vlog2.pop %v146
    %v155 = vmul.f32 %v154, 0.6931472
    %v156 = vmul.f32 %v149, %v155
    %v157 = vsub.f32 %v153, %v156
    %v158 = vlaneseq
    %v159 = vshrl.u32 %v158, 7
    %s160 = smul.u32 0, 8
    %v161 = vstv %s160
    %v162 = vadd.s32 %v159, %v161
    %vm163 = vcmp.lt.s32.totalorder %v162, 8
    %vm164 = vcmp.gt.f32.partialorder %v149, 0.0
    %vm165 = vmand %vm164, %vm163
    %v166 = vsub.f32 0.0, %v157
    %v167 = vsel %vm165, %v149, 1.0
    %v168 = vrcp.pop %v167
    %v169 = vmul.f32 %v166, %v168
    %v170 = vsel %vm165, %v169, 0.0
    %v171 = vmul.f32 %v170, 0.1
    %vm172 = vcmask 7168
    %173 = vst.msk [vmem:[%s4] sm:$0xff] %vm172, %v171
    %v174 = vsel %vm165, 1, 0
    %v175 = vcvt.s32.f32 %v174
    %176 = vst.msk [vmem:[%s5] sm:$0xff] %vm172, %v175
    // Predicated region
    $region22: #{tpu_custom_call.1} parent=1 // pred_check
      _
    $region23: #{tpu_custom_call.1} parent=1 // pred_check_branch
      %178 = sbr.rel (0) target = $region25
    $region24: #{tpu_custom_call.1} parent=1 // pred_region
      _
    $region25: #{tpu_custom_call.1} parent=1 // pred_fallthru
      _
    // Predicated region
    $region26: #{tpu_custom_call.1} parent=1 // pred_check
      _
    $region27: #{tpu_custom_call.1} parent=1 // pred_check_branch
      %180 = sbr.rel (0) target = $region29
    $region28: #{tpu_custom_call.1} parent=1 // pred_region
      _
    $region29: #{tpu_custom_call.1} parent=1 // pred_fallthru
      _
    // Predicated region
    $region30: #{tpu_custom_call.1} parent=1 // pred_check
      _
    $region31: #{tpu_custom_call.1} parent=1 // pred_check_branch
      %182 = sbr.rel (0) target = $region33
    $region32: #{tpu_custom_call.1} parent=1 // pred_region
      _
    $region33: #{tpu_custom_call.1} parent=1 // pred_fallthru
      _
    // Predicated region
    $region34: #{tpu_custom_call.1} parent=1 // pred_check
      _
    $region35: #{tpu_custom_call.1} parent=1 // pred_check_branch
      %184 = sbr.rel (0) target = $region37
    $region36: #{tpu_custom_call.1} parent=1 // pred_region
      _
    $region37: #{tpu_custom_call.1} parent=1 // pred_fallthru
      _
    %185 = vsyncpa [#allocation3], 1

</llo_original>
